<compile_context>
chip_gen: v7x
topology: tpu7x:2x2x1
jax: 0.10.0
libtpu: 0.0.40
codegen_flags: <defaults>
</compile_context>

<pallas_src>
import functools

import jax
import jax.numpy as jnp
from jax.experimental import pallas as pl
from jax.experimental.pallas import tpu as pltpu


# ----------------------------------------------------------------------------
# Pallas kernel
#   x_ref:   (tb, n*d)        flattened face features
#   pos_ref: (1, (n+1)*d)     positional embedding with cls folded into [0:d)
#   o_ref:   (tb, (n+1)*d)    flattened output
# ----------------------------------------------------------------------------
def _embed_kernel(x_ref, pos_ref, o_ref, *, d):
    tb = o_ref.shape[0]
    # Row 0 (cls token + pos[0], fused outside the kernel): broadcast over batch.
    o_ref[:, 0:d] = jnp.broadcast_to(pos_ref[:, 0:d], (tb, d))
    # Rows 1..n: face features + positional rows 1..n (pos broadcast over tb).
    o_ref[:, d:] = x_ref[...] + pos_ref[:, d:]


# Live (non-double-buffered) block-byte budget; double-buffered footprint stays
# under ~24-26 MiB, which fits v5e/v6e/v7x scoped-VMEM limits with headroom.
_BLOCK_BUDGET_BYTES = 12 * 1024 * 1024


def _pick_batch_tile(b, cap):
    """Largest batch tile that (a) divides b, (b) satisfies the sublane rule
    (multiple of 8, or the full batch), (c) fits the VMEM budget `cap`, and
    (d) when possible keeps >= 2 grid steps so both TensorCores get work."""
    divisors = [t for t in range(1, b + 1) if b % t == 0]
    legal = [t for t in divisors if (t % 8 == 0 or t == b)]
    in_budget = [t for t in legal if t <= cap] or [min(legal)]
    multi_step = [t for t in in_budget if b // t >= 2]
    return max(multi_step) if multi_step else max(in_budget)


# ----------------------------------------------------------------------------
# ImageEmbedder_s forward
# ----------------------------------------------------------------------------
def image_embedder_forward(face_features, cls_token, pos_embedding,
                           *, dropout_rate=0.0, training=False):
    """face_features: (b, n, d); cls_token: (1, 1, d); pos_embedding: (1, P+1, d).

    Returns (b, n+1, d) = concat(cls, x) + pos_embedding[:, :n+1].
    """
    b, n, d = face_features.shape
    assert cls_token.shape == (1, 1, d)
    assert pos_embedding.shape[0] == 1 and pos_embedding.shape[2] == d
    assert pos_embedding.shape[1] >= n + 1

    if training and dropout_rate > 0.0:
        # TODO(synk): training-mode dropout (pltpu.prng_seed / prng_random_bits mask).
        raise NotImplementedError("dropout with p > 0 in training mode is not implemented")

    # torch.cat requires matching dtypes and `x += pos` is in-place, so the
    # reference result keeps x's dtype; mirror that by casting the tiny params.
    out_dtype = face_features.dtype
    dtype_bytes = jnp.dtype(out_dtype).itemsize

    # Fold cls_token into positional row 0 (tiny (1,1,d) op, done once outside).
    pos = pos_embedding[:, :n + 1, :].astype(out_dtype)
    pos = pos.at[:, 0:1, :].add(cls_token.astype(out_dtype))

    # Flatten (tokens, hidden) into one lane-dense axis (free reshape: row-major).
    row_in = n * d
    row_out = (n + 1) * d
    x_flat = face_features.reshape(b, row_in)
    pos_flat = pos.reshape(1, row_out)

    # Batch tile from the VMEM budget.
    per_row_bytes = (row_in + row_out) * dtype_bytes
    pos_bytes = row_out * dtype_bytes
    cap = max(1, (_BLOCK_BUDGET_BYTES - pos_bytes) // per_row_bytes)
    tb = _pick_batch_tile(b, cap)
    grid = (b // tb,)

    block_bytes = tb * per_row_bytes + pos_bytes
    # Explicit scoped-VMEM limit: double-buffered footprint + headroom, clamped
    # to [32 MiB, 64 MiB] so it is valid on all generations (v7x has 64 MiB).
    vmem_limit = int(min(64 * 2**20, max(32 * 2**20, 2 * block_bytes + (2 << 20))))

    kernel = functools.partial(_embed_kernel, d=d)
    out_flat = pl.pallas_call(
        kernel,
        out_shape=jax.ShapeDtypeStruct((b, row_out), out_dtype),
        grid=grid,
        in_specs=[
            pl.BlockSpec((tb, row_in), lambda i: (i, 0)),     # x (flattened)
            pl.BlockSpec((1, row_out), lambda i: (0, 0)),     # fused pos (constant block)
        ],
        out_specs=pl.BlockSpec((tb, row_out), lambda i: (i, 0)),
        compiler_params=pltpu.CompilerParams(
            dimension_semantics=("parallel",),
            vmem_limit_bytes=vmem_limit),
    )(x_flat, pos_flat)

    return out_flat.reshape(b, n + 1, d)


# ----------------------------------------------------------------------------
# Demo
# ----------------------------------------------------------------------------
if __name__ == "__main__":
    key = jax.random.PRNGKey(0)
    k_x, k_cls, k_pos = jax.random.split(key, 3)

    dim = 32
    image_size = 32
    patch_size = 8
    num_patches = (image_size // patch_size) ** 2   # 16
    batch = 2
    n_tokens = 8                                    # <= num_patches

    face_features = jax.random.normal(k_x, (batch, n_tokens, dim), dtype=jnp.float32)
    cls_token = jax.random.normal(k_cls, (1, 1, dim), dtype=jnp.float32)
    pos_embedding = jax.random.normal(k_pos, (1, num_patches + 1, dim), dtype=jnp.float32)

    out = image_embedder_forward(face_features, cls_token, pos_embedding)
    out = jax.block_until_ready(out)

    # Reference (plain JAX) check.
    cls_b = jnp.broadcast_to(cls_token, (batch, 1, dim))
    ref = jnp.concatenate([cls_b, face_features], axis=1) \
        + pos_embedding[:, :n_tokens + 1, :]

    assert out.shape == (batch, n_tokens + 1, dim)
    assert jnp.allclose(out, ref, atol=1e-6, rtol=1e-6)

    print("KERNEL_OK")
</pallas_src>

<mosaic_0001>
module attributes {stable_mosaic.version = 11 : i64} {
  func.func @_embed_kernel(%arg0: i32, %arg1: memref<2x256xf32, #tpu.memory_space<vmem>>, %arg2: memref<1x288xf32, #tpu.memory_space<vmem>>, %arg3: memref<2x288xf32, #tpu.memory_space<vmem>>) attributes {dimension_semantics = [#tpu.dimension_semantics<parallel>], iteration_bounds = array<i64: 1>, scalar_prefetch = 0 : i64, scratch_operands = 0 : i64, tpu.core_type = #tpu.core_type<tc>, window_params = [{transform_indices = @transform_0, window_bounds = array<i64: 2, 256>}, {pipeline_mode = #tpu.pipeline_mode<synchronous>, transform_indices = @transform_1, window_bounds = array<i64: 1, 288>}, {transform_indices = @transform_2, window_bounds = array<i64: 2, 288>}]} {
    %c0 = arith.constant 0 : index
    %c0_0 = arith.constant 0 : index
    %0 = vector.load %arg2[%c0, %c0_0] : memref<1x288xf32, #tpu.memory_space<vmem>>, vector<1x32xf32>
    %1 = vector.shape_cast %0 : vector<1x32xf32> to vector<1x32xf32>
    %2 = vector.broadcast %1 : vector<1x32xf32> to vector<2x32xf32>
    %c0_1 = arith.constant 0 : index
    %c0_2 = arith.constant 0 : index
    %3 = vector.load %arg3[%c0_1, %c0_2] : memref<2x288xf32, #tpu.memory_space<vmem>>, vector<2x32xf32>
    tpu.vector_store %arg3[%c0_1, %c0_2], %2 {strides = array<i32>} : memref<2x288xf32, #tpu.memory_space<vmem>>, vector<2x32xf32>,
    %c0_3 = arith.constant 0 : index
    %c0_4 = arith.constant 0 : index
    %4 = vector.load %arg1[%c0_3, %c0_4] : memref<2x256xf32, #tpu.memory_space<vmem>>, vector<2x256xf32>
    %c0_5 = arith.constant 0 : index
    %c32 = arith.constant 32 : index
    %5 = vector.load %arg2[%c0_5, %c32] : memref<1x288xf32, #tpu.memory_space<vmem>>, vector<1x256xf32>
    %6 = vector.broadcast %5 : vector<1x256xf32> to vector<2x256xf32>
    %7 = arith.addf %4, %6 : vector<2x256xf32>
    %c0_6 = arith.constant 0 : index
    %c32_7 = arith.constant 32 : index
    %8 = vector.load %arg3[%c0_6, %c32_7] : memref<2x288xf32, #tpu.memory_space<vmem>>, vector<2x256xf32>
    tpu.vector_store %arg3[%c0_6, %c32_7], %7 {strides = array<i32>} : memref<2x288xf32, #tpu.memory_space<vmem>>, vector<2x256xf32>,
    return
  }
  func.func @transform_0(%arg0: i32) -> (i32, i32) {
    %c0_i32 = arith.constant 0 : i32
    %c0_i32_0 = arith.constant 0 : i32
    return %arg0, %c0_i32 : i32, i32
  }
  func.func @transform_1(%arg0: i32) -> (i32, i32) {
    %c0_i32 = arith.constant 0 : i32
    %c0_i32_0 = arith.constant 0 : i32
    %c0_i32_1 = arith.constant 0 : i32
    return %c0_i32, %c0_i32_0 : i32, i32
  }
  func.func @transform_2(%arg0: i32) -> (i32, i32) {
    %c0_i32 = arith.constant 0 : i32
    %c0_i32_0 = arith.constant 0 : i32
    return %arg0, %c0_i32 : i32, i32
  }
}

</mosaic_0001>

<llo_original>
// kernel: tpu_custom_call.1
$region0: #{tpu_custom_call.1}
  #allocation0 [shape = 'u32[]', space=smem, size = 0x4, offset = 0x4, fixed_abs, tag = 'smem constant byte address 0x4 - core index']
  #allocation1 [shape = 'u32[144,128]{1,0:T(1,128)}', space=vmem, size = 0x12000, scoped, tag = 'internal scratch']
  %s0 = inlined_call_operand.hbm [shape: f32[2,256], index: 0, kind: input, shape index: {}]
  %s1 = inlined_call_operand.vmem [shape: f32[1,288], index: 1, kind: input, shape index: {}]
  %s2 = inlined_call_operand.hbm [shape: f32[2,288], index: 2, kind: output, shape index: {}]
  %s3 = sld [smem:[#allocation0]]
  $region22: #{tpu_custom_call.1} parent=0
    _
  %s5 = ssub.s32 1, %s3
  %s6 = scalar_select 0, %s5, %s3
  $region1: #{tpu_custom_call.1} parent=0
    #allocation2 [shape = 'u8[2048]{0}', space=vmem, size = 0x800, scoped, tag = 'input window, operand 0, single buffered']
    #allocation3 [shape = 's32[1]{0}', space=sflag, size = 0x4, scoped, tag = 'scoped memory for tpu_custom_call.1']
    #allocation4 [shape = 's32[1]{0}', space=sflag, size = 0x4, scoped, tag = 'scoped memory for tpu_custom_call.1']
    #allocation5 [shape = 'u8[3072]{0}', space=vmem, size = 0xc00, scoped, tag = 'output window, operand 0, single buffered']
    %7 = vsyncpa [#allocation3], 0
    %8 = vsyncpa [#allocation4], 0
    // Predicated region
    $region2: #{tpu_custom_call.1} parent=1 // pred_check
      _
    $region3: #{tpu_custom_call.1} parent=1 // pred_check_branch
      %10 = sbr.rel (0) target = $region5
    $region4: #{tpu_custom_call.1} parent=1 // pred_region
      %s12 = ssub.s32 64, 64
      %13 = vsyncadd [#allocation3], %s12
      %s15 = sshll.u32 [#allocation2], 4
      %s16 = int_to_ptr.vmem [resolvable:$true] %s15
      %18 = dma.hbm_to_vmem [thread:$0]  %s0, 64, %s16, [#allocation3]
    $region5: #{tpu_custom_call.1} parent=1 // pred_fallthru
      _
    // Predicated region
    $region6: #{tpu_custom_call.1} parent=1 // pred_check
      _
    $region7: #{tpu_custom_call.1} parent=1 // pred_check_branch
      %20 = sbr.rel (0) target = $region9
    $region8: #{tpu_custom_call.1} parent=1 // pred_region
      _
    $region9: #{tpu_custom_call.1} parent=1 // pred_fallthru
      _
    // Predicated region
    $region10: #{tpu_custom_call.1} parent=1 // pred_check
      _
    $region11: #{tpu_custom_call.1} parent=1 // pred_check_branch
      %22 = sbr.rel (0) target = $region13
    $region12: #{tpu_custom_call.1} parent=1 // pred_region
      %23 = dma.done [#allocation3], 64
    $region13: #{tpu_custom_call.1} parent=1 // pred_fallthru
      _
    %v24 = vld [vmem:[%s1] sm:$0x1]
    %v26 = vlaneseq
    %v27 = vshrl.u32 %v26, 7
    %v28 = vsub.s32 0, %v27
    %v29 = vrot.slane %v24, %v28
    %vm31 = vcmask 254976
    %32 = vst.msk [vmem:[#allocation5] sm:$0x3] %vm31, %v29
    %v33 = vld [vmem:[#allocation2] sm:$0xf]
    %v34 = vld [vmem:[%s1] sm:$0x7]
    %v36 = vlaneseq
    %v37 = vshrl.u32 %v36, 7
    %v38 = vsub.s32 0, %v37
    %v39 = vrot.slane %v34, %v38
    %v40 = vlaneseq
    %v41 = vshrl.u32 %v40, 7
    %v42 = vsub.s32 1, %v41
    %v43 = vrot.slane %v34, %v42
    %v44 = vlaneseq
    %v45 = vshrl.u32 %v44, 7
    %v46 = vsub.s32 2, %v45
    %v47 = vrot.slane %v34, %v46
    %v48 = vcombine.low %v39, %v43
    %v50 = vunpack.c.l.s4 1983009808
    %v51 = vunpack.c.0.s8 %v50
    %v52 = vlaneseq
    %v53 = vshrl.u32 %v52, 7
    %v54 = vsub.s32 %v51, %v53
    %v55 = vrot.slane %v48, %v54
    %v57 = vunpack.c.l.s4 1983009808
    %v58 = vunpack.c.0.s8 %v57
    %v59 = vlaneseq
    %v60 = vshrl.u32 %v59, 7
    %v61 = vsub.s32 %v58, %v60
    %v62 = vrot.slane %v47, %v61
    %v63 = vcombine.low %v55, %v62
    %64 = vrot.lane.b32.xlu0 %v63, 96
    %v65 = vpop.permute.xlu0 %64
    %v66 = vrot.slane %v65, 2
    %vm67 = vcmask 785408
    %v68 = vsel %vm67, %v65, %v66
    %v70 = vadd.f32 %v33, %v68
    %72 = vrot.lane.b32.xlu0 %v70, 32
    %v73 = vpop.permute.xlu0 %72
    %v74 = vrot.slane %v73, 6
    %vm75 = vcmask 261120
    %v76 = vsel %vm75, %v74, %v73
    %vm78 = vcmask 1041664
    %vm79 = vcmask 1043458
    %vm80 = vmor %vm79, %vm78
    %vm81 = vcmask 259076
    %vm82 = vmor %vm81, %vm80
    %83 = vst.msk [vmem:[#allocation5] sm:$0x3f] %vm82, %v76
    // Predicated region
    $region14: #{tpu_custom_call.1} parent=1 // pred_check
      _
    $region15: #{tpu_custom_call.1} parent=1 // pred_check_branch
      %85 = sbr.rel (0) target = $region17
    $region16: #{tpu_custom_call.1} parent=1 // pred_region
      %s87 = ssub.s32 96, 96
      %88 = vsyncadd [#allocation4], %s87
      %s90 = sshll.u32 [#allocation5], 4
      %s91 = int_to_ptr.vmem [resolvable:$true] %s90
      %93 = dma.vmem_to_hbm [thread:$0]  %s91, 96, %s2, [#allocation4]
    $region17: #{tpu_custom_call.1} parent=1 // pred_fallthru
      _
    // Predicated region
    $region18: #{tpu_custom_call.1} parent=1 // pred_check
      _
    $region19: #{tpu_custom_call.1} parent=1 // pred_check_branch
      %95 = sbr.rel (0) target = $region21
    $region20: #{tpu_custom_call.1} parent=1 // pred_region
      %96 = dma.done [#allocation4], 96
    $region21: #{tpu_custom_call.1} parent=1 // pred_fallthru
      _
    %97 = vsyncpa [#allocation3], 1
    %98 = vsyncpa [#allocation4], 1

</llo_original>
